<compile_context>
chip_gen: v7x
topology: tpu7x:2x2x1
jax: 0.10.0
libtpu: 0.0.40
codegen_flags: <defaults>
</compile_context>

<pallas_src>
import functools

import jax
import jax.numpy as jnp
from jax.experimental import pallas as pl
from jax.experimental.pallas import tpu as pltpu

HIDDEN = 512
MIN_LOG_STD = -20.0
MAX_LOG_STD = 2.0

_LANE = 128
_TILE_GRANULE = 16   # bf16 vreg packs (16, 128): round batch tiles to 16 rows
_MAX_TM = 1024       # max batch-tile rows (working set stays ~8 MiB of VMEM)


def _round_up(x, m):
    return ((x + m - 1) // m) * m


def _actor_kernel(s_ref, w1_ref, b1_ref, w2_ref, b2_ref, wh_ref, bh_ref,
                  out_ref, *, action_dim):
    # layer 1: relu(state @ W1 + b1)   (bf16 operands, f32 accumulate)
    a = jnp.dot(s_ref[...], w1_ref[...], preferred_element_type=jnp.float32)
    a = jnp.maximum(a + b1_ref[...], 0.0)
    # layer 2: relu(a @ W2 + b2)
    a = jnp.dot(a.astype(jnp.bfloat16), w2_ref[...],
                preferred_element_type=jnp.float32)
    a = jnp.maximum(a + b2_ref[...], 0.0)
    # fused heads: [mean | log_std | zero-pad] in one lane-dense matmul
    y = jnp.dot(a.astype(jnp.bfloat16), wh_ref[...],
                preferred_element_type=jnp.float32)
    y = y + bh_ref[...]
    # clamp every lane >= action_dim (log_std lanes; padded lanes are discarded
    # by the wrapper slice, so clamping them too is harmless and saves a vcmp).
    lane = jax.lax.broadcasted_iota(jnp.int32, y.shape, dimension=1)
    y = jnp.where(lane >= action_dim, jnp.clip(y, MIN_LOG_STD, MAX_LOG_STD), y)
    out_ref[...] = y.astype(out_ref.dtype)


def pack_actor_params(params):
    """Convert f32 PyTorch-like params into the kernel's packed bf16 layout."""
    w1, b1, w2, b2, wm, bm, wls, bls = params
    action_dim = wm.shape[1]
    head_pad = _LANE * pl.cdiv(2 * action_dim, _LANE)

    wh = jnp.concatenate([wm, wls], axis=1)                     # [HIDDEN, 2A]
    wh = jnp.pad(wh, ((0, 0), (0, head_pad - 2 * action_dim)))  # lane-dense
    bh = jnp.concatenate([bm, bls], axis=1)
    bh = jnp.pad(bh, ((0, 0), (0, head_pad - 2 * action_dim)))

    packed = (
        w1.astype(jnp.bfloat16), b1.astype(jnp.float32),
        w2.astype(jnp.bfloat16), b2.astype(jnp.float32),
        wh.astype(jnp.bfloat16), bh.astype(jnp.float32),
    )
    return packed, action_dim, head_pad


def _pick_tile(B):
    """Batch-tile rows: 16-row granule, <=1024 rows, >=2 grid steps when the
    batch allows it (so the parallel axis can shard across v7x's two TCs)."""
    b16 = _round_up(B, _TILE_GRANULE)
    if b16 <= _TILE_GRANULE:
        return _TILE_GRANULE
    if b16 <= 2 * _MAX_TM:
        return _round_up(pl.cdiv(b16, 2), _TILE_GRANULE)
    return _MAX_TM


def actor_forward(state, packed_params, action_dim, head_pad):
    """state: [B, state_dim] float32. Returns (mean, log_std), each [B, action_dim]."""
    w1, b1, w2, b2, wh, bh = packed_params
    B, state_dim = state.shape

    tm = _pick_tile(B)
    b_pad = _round_up(B, tm)
    if b_pad != B:
        state = jnp.pad(state, ((0, b_pad - B), (0, 0)))
    state = state.astype(jnp.bfloat16)

    grid = (b_pad // tm,)

    kernel = functools.partial(_actor_kernel, action_dim=action_dim)

    # Grid-invariant operands: same block every step, single pipeline buffer.
    def _const_spec(shape):
        return pl.BlockSpec(shape, lambda i: (0, 0),
                            pipeline_mode=pl.Buffered(1))

    weight_bytes = (w1.size + w2.size + wh.size) * 2 + (b1.size + b2.size + bh.size) * 4
    cost = pl.CostEstimate(
        flops=2 * b_pad * (state_dim * HIDDEN + HIDDEN * HIDDEN + HIDDEN * head_pad),
        transcendentals=0,
        bytes_accessed=b_pad * state_dim * 2 + weight_bytes + b_pad * head_pad * 4,
    )

    out = pl.pallas_call(
        kernel,
        out_shape=jax.ShapeDtypeStruct((b_pad, head_pad), jnp.float32),
        grid=grid,
        in_specs=[
            pl.BlockSpec((tm, state_dim), lambda i: (i, 0)),
            _const_spec((state_dim, HIDDEN)),
            _const_spec((1, HIDDEN)),
            _const_spec((HIDDEN, HIDDEN)),
            _const_spec((1, HIDDEN)),
            _const_spec((HIDDEN, head_pad)),
            _const_spec((1, head_pad)),
        ],
        out_specs=pl.BlockSpec((tm, head_pad), lambda i: (i, 0)),
        compiler_params=pltpu.CompilerParams(
            dimension_semantics=("parallel",),
            vmem_limit_bytes=32 * 1024 * 1024),
        cost_estimate=cost,
    )(state, w1, b1, w2, b2, wh, bh)

    mean = out[:B, :action_dim]
    log_std = out[:B, action_dim:2 * action_dim]
    return mean, log_std


def init_actor_params(key, state_dim, action_dim):
    """Deterministic init mimicking nn.Linear (uniform +-1/sqrt(fan_in)).
    Weights stored as [in, out]."""
    ks = jax.random.split(key, 8)

    def linear(kw, kb, fan_in, fan_out):
        bound = 1.0 / jnp.sqrt(jnp.float32(fan_in))
        w = jax.random.uniform(kw, (fan_in, fan_out), jnp.float32, -bound, bound)
        b = jax.random.uniform(kb, (1, fan_out), jnp.float32, -bound, bound)
        return w, b

    w1, b1 = linear(ks[0], ks[1], state_dim, HIDDEN)
    w2, b2 = linear(ks[2], ks[3], HIDDEN, HIDDEN)
    wm, bm = linear(ks[4], ks[5], HIDDEN, action_dim)
    wls, bls = linear(ks[6], ks[7], HIDDEN, action_dim)
    return (w1, b1, w2, b2, wm, bm, wls, bls)


def actor_forward_ref(state, params):
    """Pure-JAX reference mirroring the kernel's bf16-weight / f32-accumulate math."""
    w1, b1, w2, b2, wm, bm, wls, bls = params
    bf = lambda x: x.astype(jnp.bfloat16)
    a = jnp.dot(bf(state), bf(w1), preferred_element_type=jnp.float32) + b1
    a = jnp.maximum(a, 0.0)
    a = jnp.dot(bf(a), bf(w2), preferred_element_type=jnp.float32) + b2
    a = jnp.maximum(a, 0.0)
    mean = jnp.dot(bf(a), bf(wm), preferred_element_type=jnp.float32) + bm
    log_std = jnp.dot(bf(a), bf(wls), preferred_element_type=jnp.float32) + bls
    log_std = jnp.clip(log_std, MIN_LOG_STD, MAX_LOG_STD)
    return mean, log_std


if __name__ == "__main__":
    key = jax.random.PRNGKey(0)
    k_params, k_state, k_state2 = jax.random.split(key, 3)

    state_dim = 16
    action_dim = 8
    # max_action only scales the sampled action in select_action (not forward);
    # the forward pass (mean, log_std) implemented here does not use it.

    params = init_actor_params(k_params, state_dim, action_dim)
    packed, a_dim, head_pad = pack_actor_params(params)

    # --- tiny batch (single 16-row tile) ---
    batch = 2
    state = jax.random.normal(k_state, (batch, state_dim), jnp.float32)
    mean, log_std = actor_forward(state, packed, a_dim, head_pad)
    jax.block_until_ready((mean, log_std))

    mean_ref, log_std_ref = actor_forward_ref(state, params)
    assert mean.shape == (batch, action_dim)
    assert log_std.shape == (batch, action_dim)
    assert jnp.allclose(mean, mean_ref, atol=2e-3, rtol=2e-3)
    assert jnp.allclose(log_std, log_std_ref, atol=2e-3, rtol=2e-3)

    # --- medium batch (exercises the 2-step parallel grid path) ---
    batch2 = 160
    state2 = jax.random.normal(k_state2, (batch2, state_dim), jnp.float32)
    mean2, log_std2 = actor_forward(state2, packed, a_dim, head_pad)
    jax.block_until_ready((mean2, log_std2))
    mean2_ref, log_std2_ref = actor_forward_ref(state2, params)
    assert mean2.shape == (batch2, action_dim)
    assert jnp.allclose(mean2, mean2_ref, atol=2e-3, rtol=2e-3)
    assert jnp.allclose(log_std2, log_std2_ref, atol=2e-3, rtol=2e-3)

    print("KERNEL_OK")
</pallas_src>

<mosaic_0001>
module attributes {stable_mosaic.version = 11 : i64} {
  func.func @_actor_kernel(%arg0: i32, %arg1: memref<16x16xbf16, #tpu.memory_space<vmem>>, %arg2: memref<16x512xbf16, #tpu.memory_space<vmem>>, %arg3: memref<1x512xf32, #tpu.memory_space<vmem>>, %arg4: memref<512x512xbf16, #tpu.memory_space<vmem>>, %arg5: memref<1x512xf32, #tpu.memory_space<vmem>>, %arg6: memref<512x128xbf16, #tpu.memory_space<vmem>>, %arg7: memref<1x128xf32, #tpu.memory_space<vmem>>, %arg8: memref<16x128xf32, #tpu.memory_space<vmem>>) attributes {dimension_semantics = [#tpu.dimension_semantics<parallel>], iteration_bounds = array<i64: 1>, scalar_prefetch = 0 : i64, scratch_operands = 0 : i64, tpu.core_type = #tpu.core_type<tc>, window_params = [{transform_indices = @transform_0, window_bounds = array<i64: 16, 16>}, {pipeline_mode = #tpu.pipeline_mode<synchronous>, transform_indices = @transform_1, window_bounds = array<i64: 16, 512>}, {pipeline_mode = #tpu.pipeline_mode<synchronous>, transform_indices = @transform_2, window_bounds = array<i64: 1, 512>}, {pipeline_mode = #tpu.pipeline_mode<synchronous>, transform_indices = @transform_3, window_bounds = array<i64: 512, 512>}, {pipeline_mode = #tpu.pipeline_mode<synchronous>, transform_indices = @transform_4, window_bounds = array<i64: 1, 512>}, {pipeline_mode = #tpu.pipeline_mode<synchronous>, transform_indices = @transform_5, window_bounds = array<i64: 512, 128>}, {pipeline_mode = #tpu.pipeline_mode<synchronous>, transform_indices = @transform_6, window_bounds = array<i64: 1, 128>}, {transform_indices = @transform_7, window_bounds = array<i64: 16, 128>}]} {
    %c0 = arith.constant 0 : index
    %c0_0 = arith.constant 0 : index
    %0 = vector.load %arg1[%c0, %c0_0] : memref<16x16xbf16, #tpu.memory_space<vmem>>, vector<16x16xbf16>
    %c0_1 = arith.constant 0 : index
    %c0_2 = arith.constant 0 : index
    %1 = vector.load %arg2[%c0_1, %c0_2] : memref<16x512xbf16, #tpu.memory_space<vmem>>, vector<16x512xbf16>
    %cst = arith.constant dense<0.000000e+00> : vector<16x512xf32>
    %2 = tpu.matmul %0, %1, %cst {dimension_numbers = #tpu.dot_dimension_numbers<[1], [0], [0], [1], [0, 0, 1, 1], [], []>} : vector<16x16xbf16>, vector<16x512xbf16>, vector<16x512xf32> -> vector<16x512xf32>
    %c0_3 = arith.constant 0 : index
    %c0_4 = arith.constant 0 : index
    %3 = vector.load %arg3[%c0_3, %c0_4] : memref<1x512xf32, #tpu.memory_space<vmem>>, vector<1x512xf32>
    %4 = vector.broadcast %3 : vector<1x512xf32> to vector<16x512xf32>
    %5 = arith.addf %2, %4 : vector<16x512xf32>
    %cst_5 = arith.constant 0.000000e+00 : f32
    %6 = vector.broadcast %cst_5 : f32 to vector<16x512xf32>
    %7 = arith.maximumf %5, %6 : vector<16x512xf32>
    %8 = arith.truncf %7 : vector<16x512xf32> to vector<16x512xbf16>
    %c0_6 = arith.constant 0 : index
    %c0_7 = arith.constant 0 : index
    %9 = vector.load %arg4[%c0_6, %c0_7] : memref<512x512xbf16, #tpu.memory_space<vmem>>, vector<512x512xbf16>
    %cst_8 = arith.constant dense<0.000000e+00> : vector<16x512xf32>
    %10 = tpu.matmul %8, %9, %cst_8 {dimension_numbers = #tpu.dot_dimension_numbers<[1], [0], [0], [1], [0, 0, 1, 1], [], []>} : vector<16x512xbf16>, vector<512x512xbf16>, vector<16x512xf32> -> vector<16x512xf32>
    %c0_9 = arith.constant 0 : index
    %c0_10 = arith.constant 0 : index
    %11 = vector.load %arg5[%c0_9, %c0_10] : memref<1x512xf32, #tpu.memory_space<vmem>>, vector<1x512xf32>
    %12 = vector.broadcast %11 : vector<1x512xf32> to vector<16x512xf32>
    %13 = arith.addf %10, %12 : vector<16x512xf32>
    %cst_11 = arith.constant 0.000000e+00 : f32
    %14 = vector.broadcast %cst_11 : f32 to vector<16x512xf32>
    %15 = arith.maximumf %13, %14 : vector<16x512xf32>
    %16 = arith.truncf %15 : vector<16x512xf32> to vector<16x512xbf16>
    %c0_12 = arith.constant 0 : index
    %c0_13 = arith.constant 0 : index
    %17 = vector.load %arg6[%c0_12, %c0_13] : memref<512x128xbf16, #tpu.memory_space<vmem>>, vector<512x128xbf16>
    %cst_14 = arith.constant dense<0.000000e+00> : vector<16x128xf32>
    %18 = tpu.matmul %16, %17, %cst_14 {dimension_numbers = #tpu.dot_dimension_numbers<[1], [0], [0], [1], [0, 0, 1, 1], [], []>} : vector<16x512xbf16>, vector<512x128xbf16>, vector<16x128xf32> -> vector<16x128xf32>
    %c0_15 = arith.constant 0 : index
    %c0_16 = arith.constant 0 : index
    %19 = vector.load %arg7[%c0_15, %c0_16] : memref<1x128xf32, #tpu.memory_space<vmem>>, vector<1x128xf32>
    %20 = vector.broadcast %19 : vector<1x128xf32> to vector<16x128xf32>
    %21 = arith.addf %18, %20 : vector<16x128xf32>
    %22 = tpu.iota {dimensions = array<i32: 1>} : vector<16x128xi32>
    %c8_i32 = arith.constant 8 : i32
    %23 = vector.broadcast %c8_i32 : i32 to vector<16x128xi32>
    %24 = arith.cmpi sge, %22, %23 : vector<16x128xi32>
    %cst_17 = arith.constant -2.000000e+01 : f32
    %cst_18 = arith.constant 2.000000e+00 : f32
    %25 = vector.broadcast %cst_17 : f32 to vector<16x128xf32>
    %26 = arith.maximumf %25, %21 : vector<16x128xf32>
    %27 = vector.broadcast %cst_18 : f32 to vector<16x128xf32>
    %28 = arith.minimumf %27, %26 : vector<16x128xf32>
    %29 = arith.select %24, %28, %21 : vector<16x128xi1>, vector<16x128xf32>
    %c0_19 = arith.constant 0 : index
    %c0_20 = arith.constant 0 : index
    %30 = vector.load %arg8[%c0_19, %c0_20] : memref<16x128xf32, #tpu.memory_space<vmem>>, vector<16x128xf32>
    tpu.vector_store %arg8[%c0_19, %c0_20], %29 {strides = array<i32>} : memref<16x128xf32, #tpu.memory_space<vmem>>, vector<16x128xf32>,
    return
  }
  func.func @transform_0(%arg0: i32) -> (i32, i32) {
    %c0_i32 = arith.constant 0 : i32
    %c0_i32_0 = arith.constant 0 : i32
    return %arg0, %c0_i32 : i32, i32
  }
  func.func @transform_1(%arg0: i32) -> (i32, i32) {
    %c0_i32 = arith.constant 0 : i32
    %c0_i32_0 = arith.constant 0 : i32
    %c0_i32_1 = arith.constant 0 : i32
    return %c0_i32, %c0_i32_0 : i32, i32
  }
  func.func @transform_2(%arg0: i32) -> (i32, i32) {
    %c0_i32 = arith.constant 0 : i32
    %c0_i32_0 = arith.constant 0 : i32
    %c0_i32_1 = arith.constant 0 : i32
    return %c0_i32, %c0_i32_0 : i32, i32
  }
  func.func @transform_3(%arg0: i32) -> (i32, i32) {
    %c0_i32 = arith.constant 0 : i32
    %c0_i32_0 = arith.constant 0 : i32
    %c0_i32_1 = arith.constant 0 : i32
    return %c0_i32, %c0_i32_0 : i32, i32
  }
  func.func @transform_4(%arg0: i32) -> (i32, i32) {
    %c0_i32 = arith.constant 0 : i32
    %c0_i32_0 = arith.constant 0 : i32
    %c0_i32_1 = arith.constant 0 : i32
    return %c0_i32, %c0_i32_0 : i32, i32
  }
  func.func @transform_5(%arg0: i32) -> (i32, i32) {
    %c0_i32 = arith.constant 0 : i32
    %c0_i32_0 = arith.constant 0 : i32
    %c0_i32_1 = arith.constant 0 : i32
    return %c0_i32, %c0_i32_0 : i32, i32
  }
  func.func @transform_6(%arg0: i32) -> (i32, i32) {
    %c0_i32 = arith.constant 0 : i32
    %c0_i32_0 = arith.constant 0 : i32
    %c0_i32_1 = arith.constant 0 : i32
    return %c0_i32, %c0_i32_0 : i32, i32
  }
  func.func @transform_7(%arg0: i32) -> (i32, i32) {
    %c0_i32 = arith.constant 0 : i32
    %c0_i32_0 = arith.constant 0 : i32
    return %arg0, %c0_i32 : i32, i32
  }
}

</mosaic_0001>

<llo_original>
// kernel: tpu_custom_call.1
$region0: #{tpu_custom_call.1}
  #allocation0 [shape = 'u32[]', space=smem, size = 0x4, offset = 0x4, fixed_abs, tag = 'smem constant byte address 0x4 - core index']
  #allocation1 [shape = 'u32[144,128]{1,0:T(1,128)}', space=vmem, size = 0x12000, scoped, tag = 'internal scratch']
  %s0 = inlined_call_operand.hbm [shape: bf16[16,16], index: 0, kind: input, shape index: {}]
  %s1 = inlined_call_operand.hbm [shape: bf16[16,512], index: 1, kind: input, shape index: {}]
  %s2 = inlined_call_operand.vmem [shape: f32[1,512], index: 2, kind: input, shape index: {}]
  %s3 = inlined_call_operand.hbm [shape: bf16[512,512], index: 3, kind: input, shape index: {}]
  %s4 = inlined_call_operand.vmem [shape: f32[1,512], index: 4, kind: input, shape index: {}]
  %s5 = inlined_call_operand.hbm [shape: bf16[512,128], index: 5, kind: input, shape index: {}]
  %s6 = inlined_call_operand.vmem [shape: f32[1,128], index: 6, kind: input, shape index: {}]
  %s7 = inlined_call_operand.hbm [shape: f32[16,128], index: 7, kind: output, shape index: {}]
  %s8 = sld [smem:[#allocation0]]
  $region54: #{tpu_custom_call.1} parent=0
    _
  %s10 = ssub.s32 1, %s8
  %s11 = scalar_select 0, %s10, %s8
  $region1: #{tpu_custom_call.1} parent=0
    #allocation2 [shape = 'u8[4096]{0}', space=vmem, size = 0x1000, scoped, tag = 'input window, operand 0, single buffered']
    #allocation3 [shape = 's32[1]{0}', space=sflag, size = 0x4, scoped, tag = 'scoped memory for tpu_custom_call.1']
    #allocation4 [shape = 's32[1]{0}', space=sflag, size = 0x4, scoped, tag = 'scoped memory for tpu_custom_call.1']
    #allocation5 [shape = 'u8[16384]{0}', space=vmem, size = 0x4000, scoped, tag = 'input window, operand 1, single buffered']
    #allocation6 [shape = 's32[1]{0}', space=sflag, size = 0x4, scoped, tag = 'scoped memory for tpu_custom_call.1']
    #allocation7 [shape = 'u8[524288]{0}', space=vmem, size = 0x80000, scoped, tag = 'input window, operand 3, single buffered']
    #allocation8 [shape = 'u8[131072]{0}', space=vmem, size = 0x20000, scoped, tag = 'input window, operand 5, single buffered']
    #allocation9 [shape = 's32[1]{0}', space=sflag, size = 0x4, scoped, tag = 'scoped memory for tpu_custom_call.1']
    #allocation10 [shape = 'u8[8192]{0}', space=vmem, size = 0x2000, scoped, tag = 'output window, operand 0, single buffered']
    %12 = vsyncpa [#allocation3], 0
    %13 = vsyncpa [#allocation6], 0
    %14 = vsyncpa [#allocation9], 0
    %15 = vsyncpa [#allocation4], 0
    // Predicated region
    $region2: #{tpu_custom_call.1} parent=1 // pred_check
      _
    $region3: #{tpu_custom_call.1} parent=1 // pred_check_branch
      %17 = sbr.rel (0) target = $region5
    $region4: #{tpu_custom_call.1} parent=1 // pred_region
      %s19 = ssub.s32 128, 128
      %20 = vsyncadd [#allocation3], %s19
      %s21 = sshll.u32 [#allocation2], 4
      %s22 = int_to_ptr.vmem [resolvable:$true] %s21
      %27 = dma.hbm_to_vmem [thread:$0]  %s0, 128, %s22, [#allocation3], 64, 64, 4
    $region5: #{tpu_custom_call.1} parent=1 // pred_fallthru
      _
    // Predicated region
    $region6: #{tpu_custom_call.1} parent=1 // pred_check
      _
    $region7: #{tpu_custom_call.1} parent=1 // pred_check_branch
      %29 = sbr.rel (0) target = $region9
    $region8: #{tpu_custom_call.1} parent=1 // pred_region
      %s31 = ssub.s32 512, 512
      %32 = vsyncadd [#allocation6], %s31
      %s33 = sshll.u32 [#allocation5], 4
      %s34 = int_to_ptr.vmem [resolvable:$true] %s33
      %39 = dma.hbm_to_vmem [thread:$0]  %s1, 512, %s34, [#allocation6], 256, 256, 16
    $region9: #{tpu_custom_call.1} parent=1 // pred_fallthru
      _
    // Predicated region
    $region10: #{tpu_custom_call.1} parent=1 // pred_check
      _
    $region11: #{tpu_custom_call.1} parent=1 // pred_check_branch
      %41 = sbr.rel (0) target = $region13
    $region12: #{tpu_custom_call.1} parent=1 // pred_region
      _
    $region13: #{tpu_custom_call.1} parent=1 // pred_fallthru
      _
    // Predicated region
    $region14: #{tpu_custom_call.1} parent=1 // pred_check
      _
    $region15: #{tpu_custom_call.1} parent=1 // pred_check_branch
      %43 = sbr.rel (0) target = $region17
    $region16: #{tpu_custom_call.1} parent=1 // pred_region
      %s45 = ssub.s32 16384, 16384
      %46 = vsyncadd [#allocation6], %s45
      %s47 = sshll.u32 [#allocation7], 4
      %s48 = int_to_ptr.vmem [resolvable:$true] %s47
      %53 = dma.hbm_to_vmem [thread:$0]  %s3, 16384, %s48, [#allocation6], 256, 256, 16
    $region17: #{tpu_custom_call.1} parent=1 // pred_fallthru
      _
    // Predicated region
    $region18: #{tpu_custom_call.1} parent=1 // pred_check
      _
    $region19: #{tpu_custom_call.1} parent=1 // pred_check_branch
      %55 = sbr.rel (0) target = $region21
    $region20: #{tpu_custom_call.1} parent=1 // pred_region
      _
    $region21: #{tpu_custom_call.1} parent=1 // pred_fallthru
      _
    // Predicated region
    $region22: #{tpu_custom_call.1} parent=1 // pred_check
      _
    $region23: #{tpu_custom_call.1} parent=1 // pred_check_branch
      %57 = sbr.rel (0) target = $region25
    $region24: #{tpu_custom_call.1} parent=1 // pred_region
      %s59 = ssub.s32 4096, 4096
      %60 = vsyncadd [#allocation9], %s59
      %s61 = sshll.u32 [#allocation8], 4
      %s62 = int_to_ptr.vmem [resolvable:$true] %s61
      %67 = dma.hbm_to_vmem [thread:$0]  %s5, 4096, %s62, [#allocation9], 64, 64, 4
    $region25: #{tpu_custom_call.1} parent=1 // pred_fallthru
      _
    // Predicated region
    $region26: #{tpu_custom_call.1} parent=1 // pred_check
      _
    $region27: #{tpu_custom_call.1} parent=1 // pred_check_branch
      %69 = sbr.rel (0) target = $region29
    $region28: #{tpu_custom_call.1} parent=1 // pred_region
      _
    $region29: #{tpu_custom_call.1} parent=1 // pred_fallthru
      _
    // Predicated region
    $region30: #{tpu_custom_call.1} parent=1 // pred_check
      _
    $region31: #{tpu_custom_call.1} parent=1 // pred_check_branch
      %71 = sbr.rel (0) target = $region33
    $region32: #{tpu_custom_call.1} parent=1 // pred_region
      %72 = dma.done [#allocation3], 128
    $region33: #{tpu_custom_call.1} parent=1 // pred_fallthru
      _
    // Predicated region
    $region34: #{tpu_custom_call.1} parent=1 // pred_check
      _
    $region35: #{tpu_custom_call.1} parent=1 // pred_check_branch
      %74 = sbr.rel (0) target = $region37
    $region36: #{tpu_custom_call.1} parent=1 // pred_region
      %75 = dma.done [#allocation6], 512
    $region37: #{tpu_custom_call.1} parent=1 // pred_fallthru
      _
    // Predicated region
    $region38: #{tpu_custom_call.1} parent=1 // pred_check
      _
    $region39: #{tpu_custom_call.1} parent=1 // pred_check_branch
      %77 = sbr.rel (0) target = $region41
    $region40: #{tpu_custom_call.1} parent=1 // pred_region
      %78 = dma.done [#allocation6], 16384
    $region41: #{tpu_custom_call.1} parent=1 // pred_fallthru
      _
    // Predicated region
    $region42: #{tpu_custom_call.1} parent=1 // pred_check
      _
    $region43: #{tpu_custom_call.1} parent=1 // pred_check_branch
      %80 = sbr.rel (0) target = $region45
    $region44: #{tpu_custom_call.1} parent=1 // pred_region
      %81 = dma.done [#allocation9], 4096
    $region45: #{tpu_custom_call.1} parent=1 // pred_fallthru
      _
    %v83 = vld [vmem:[#allocation2] sm:$0xf]
    %v84 = vld [vmem:[#allocation2 + $0x4] sm:$0xf]
    %v85 = vld [vmem:[#allocation5] sm:$0xff]
    %v86 = vld [vmem:[#allocation5 + $0x8] sm:$0xff]
    %v87 = vld [vmem:[#allocation5 + $0x10] sm:$0xff]
    %v88 = vld [vmem:[#allocation5 + $0x18] sm:$0xff]
    %v89 = vld [vmem:[%s2] sm:$0xf]
    %v91 = vlaneseq
    %v92 = vshrl.u32 %v91, 7
    %v93 = vsub.s32 0, %v92
    %v94 = vrot.slane %v89, %v93
    %v95 = vlaneseq
    %v96 = vshrl.u32 %v95, 7
    %v97 = vsub.s32 1, %v96
    %v98 = vrot.slane %v89, %v97
    %v99 = vlaneseq
    %v100 = vshrl.u32 %v99, 7
    %v101 = vsub.s32 2, %v100
    %v102 = vrot.slane %v89, %v101
    %v103 = vlaneseq
    %v104 = vshrl.u32 %v103, 7
    %v105 = vsub.s32 3, %v104
    %v106 = vrot.slane %v89, %v105
    %v113 = vunpack.c.l.b16 %v83
    %v114 = vunpack.c.l.b16 %v84
    %v115 = vpack.c.b16 %v114, %v113
    %v120 = vunpack.c.l.b16 %v85
    %v121 = vunpack.c.h.b16 %v85
    %v122 = vunpack.c.l.b16 %v86
    %v123 = vunpack.c.h.b16 %v86
    %v124 = vunpack.c.l.b16 %v87
    %v125 = vunpack.c.h.b16 %v87
    %v126 = vunpack.c.l.b16 %v88
    %v127 = vunpack.c.h.b16 %v88
    %v128 = vpack.c.b16 %v124, %v120
    %v129 = vpack.c.b16 %v125, %v121
    %v130 = vpack.c.b16 %v126, %v122
    %v131 = vpack.c.b16 %v127, %v123
    %vm136 = vcmask 130048
    %v138 = vsel %vm136, %v115, 0
    %140 = vmatprep.subr.bf16.mxu0 %v129
    %141 = vmatpush1.bf16.msra.mxu0 %v128
    %142 = vmatprep.subr.bf16.mxu0 0
    %143 = vmatpush1.bf16.msra.mxu0 0
    %144 = vmatprep.subr.bf16.mxu0 0
    %145 = vmatpush1.bf16.msra.mxu0 0
    %146 = vmatprep.subr.bf16.mxu0 0
    %147 = vmatpush1.bf16.msra.mxu0 0
    %148 = vmatprep.subr.bf16.mxu0 0
    %149 = vmatpush1.bf16.msra.mxu0 0
    %150 = vmatprep.subr.bf16.mxu0 0
    %151 = vmatpush1.bf16.msra.mxu0 0
    %152 = vmatprep.subr.bf16.mxu0 0
    %153 = vmatpush1.bf16.msra.mxu0 0
    %154 = vmatprep.subr.bf16.mxu0 0
    %155 = vmatpush1.bf16.msra.mxu0 0
    %156 = vmatprep.subr.bf16.mxu0 0
    %157 = vmatpush1.bf16.msra.mxu0 0
    %158 = vmatprep.subr.bf16.mxu0 0
    %159 = vmatpush1.bf16.msra.mxu0 0
    %160 = vmatprep.subr.bf16.mxu0 0
    %161 = vmatpush1.bf16.msra.mxu0 0
    %162 = vmatprep.subr.bf16.mxu0 0
    %163 = vmatpush1.bf16.msra.mxu0 0
    %164 = vmatprep.subr.bf16.mxu0 0
    %165 = vmatpush1.bf16.msra.mxu0 0
    %166 = vmatprep.subr.bf16.mxu0 0
    %167 = vmatpush1.bf16.msra.mxu0 0
    %168 = vmatprep.subr.bf16.mxu0 0
    %169 = vmatpush1.bf16.msra.mxu0 0
    %170 = vmatprep.subr.bf16.mxu0 0
    %171 = vmatpush1.bf16.msra.mxu0 0
    %172 = vmatprep.mubr.bf16.mxu0 0
    %173 = vmatmul.mubr.bf16.gmra.mrb[0].mxu0 %v138
    %v174 = vpop.f32.mrb[0].mxu0
    %v175 = vadd.f32 %v94, %v174
    %v176 = vpop.f32.mrb[0].mxu0
    %v177 = vadd.f32 %v98, %v176
    %v178 = vpop.f32.mrb[0].mxu0
    %v179 = vadd.f32 %v94, %v178
    %v180 = vpop.f32.mrb[0].mxu0
    %v181 = vadd.f32 %v98, %v180
    %182 = vdwg.mxu0
    %183 = vmatprep.subr.bf16.mxu0 %v131
    %184 = vmatpush1.bf16.msra.mxu0 %v130
    %185 = vmatprep.subr.bf16.mxu0 0
    %186 = vmatpush1.bf16.msra.mxu0 0
    %187 = vmatprep.subr.bf16.mxu0 0
    %188 = vmatpush1.bf16.msra.mxu0 0
    %189 = vmatprep.subr.bf16.mxu0 0
    %190 = vmatpush1.bf16.msra.mxu0 0
    %191 = vmatprep.subr.bf16.mxu0 0
    %192 = vmatpush1.bf16.msra.mxu0 0
    %193 = vmatprep.subr.bf16.mxu0 0
    %194 = vmatpush1.bf16.msra.mxu0 0
    %195 = vmatprep.subr.bf16.mxu0 0
    %196 = vmatpush1.bf16.msra.mxu0 0
    %197 = vmatprep.subr.bf16.mxu0 0
    %198 = vmatpush1.bf16.msra.mxu0 0
    %199 = vmatprep.subr.bf16.mxu0 0
    %200 = vmatpush1.bf16.msra.mxu0 0
    %201 = vmatprep.subr.bf16.mxu0 0
    %202 = vmatpush1.bf16.msra.mxu0 0
    %203 = vmatprep.subr.bf16.mxu0 0
    %204 = vmatpush1.bf16.msra.mxu0 0
    %205 = vmatprep.subr.bf16.mxu0 0
    %206 = vmatpush1.bf16.msra.mxu0 0
    %207 = vmatprep.subr.bf16.mxu0 0
    %208 = vmatpush1.bf16.msra.mxu0 0
    %209 = vmatprep.subr.bf16.mxu0 0
    %210 = vmatpush1.bf16.msra.mxu0 0
    %211 = vmatprep.subr.bf16.mxu0 0
    %212 = vmatpush1.bf16.msra.mxu0 0
    %213 = vmatprep.subr.bf16.mxu0 0
    %214 = vmatpush1.bf16.msra.mxu0 0
    %215 = vmatprep.mubr.bf16.mxu0 0
    %216 = vmatmul.mubr.bf16.gmra.mrb[0].mxu0 %v138
    %v217 = vpop.f32.mrb[0].mxu0
    %v218 = vadd.f32 %v102, %v217
    %v219 = vpop.f32.mrb[0].mxu0
    %v220 = vadd.f32 %v106, %v219
    %v221 = vpop.f32.mrb[0].mxu0
    %v222 = vadd.f32 %v102, %v221
    %v223 = vpop.f32.mrb[0].mxu0
    %v224 = vadd.f32 %v106, %v223
    %225 = vdwg.mxu0
    %v226 = vmax.f32 %v175, 0.0
    %v227 = vmax.f32 %v177, 0.0
    %v228 = vmax.f32 %v218, 0.0
    %v229 = vmax.f32 %v220, 0.0
    %v230 = vmax.f32 %v179, 0.0
    %v231 = vmax.f32 %v181, 0.0
    %v232 = vmax.f32 %v222, 0.0
    %v233 = vmax.f32 %v224, 0.0
    %v234 = vpack.c.bf16 %v230, %v226
    %v235 = vpack.c.bf16 %v231, %v227
    %v236 = vpack.c.bf16 %v232, %v228
    %v237 = vpack.c.bf16 %v233, %v229
    %v238 = vld [vmem:[#allocation7] sm:$0xff]
    %v239 = vld [vmem:[#allocation7 + $0x8] sm:$0xff]
    %v240 = vld [vmem:[#allocation7 + $0x10] sm:$0xff]
    %v241 = vld [vmem:[#allocation7 + $0x18] sm:$0xff]
    %v242 = vld [vmem:[#allocation7 + $0x20] sm:$0xff]
    %v243 = vld [vmem:[#allocation7 + $0x28] sm:$0xff]
    %v244 = vld [vmem:[#allocation7 + $0x30] sm:$0xff]
    %v245 = vld [vmem:[#allocation7 + $0x38] sm:$0xff]
    %v246 = vld [vmem:[#allocation7 + $0x40] sm:$0xff]
    %v247 = vld [vmem:[#allocation7 + $0x48] sm:$0xff]
    %v248 = vld [vmem:[#allocation7 + $0x50] sm:$0xff]
    %v249 = vld [vmem:[#allocation7 + $0x58] sm:$0xff]
    %v250 = vld [vmem:[#allocation7 + $0x60] sm:$0xff]
    %v251 = vld [vmem:[#allocation7 + $0x68] sm:$0xff]
    %v252 = vld [vmem:[#allocation7 + $0x70] sm:$0xff]
    %v253 = vld [vmem:[#allocation7 + $0x78] sm:$0xff]
    %v254 = vld [vmem:[#allocation7 + $0x80] sm:$0xff]
    %v255 = vld [vmem:[#allocation7 + $0x88] sm:$0xff]
    %v256 = vld [vmem:[#allocation7 + $0x90] sm:$0xff]
    %v257 = vld [vmem:[#allocation7 + $0x98] sm:$0xff]
    %v258 = vld [vmem:[#allocation7 + $0xa0] sm:$0xff]
    %v259 = vld [vmem:[#allocation7 + $0xa8] sm:$0xff]
    %v260 = vld [vmem:[#allocation7 + $0xb0] sm:$0xff]
    %v261 = vld [vmem:[#allocation7 + $0xb8] sm:$0xff]
    %v262 = vld [vmem:[#allocation7 + $0xc0] sm:$0xff]
    %v263 = vld [vmem:[#allocation7 + $0xc8] sm:$0xff]
    %v264 = vld [vmem:[#allocation7 + $0xd0] sm:$0xff]
    %v265 = vld [vmem:[#allocation7 + $0xd8] sm:$0xff]
    %v266 = vld [vmem:[#allocation7 + $0xe0] sm:$0xff]
    %v267 = vld [vmem:[#allocation7 + $0xe8] sm:$0xff]
    %v268 = vld [vmem:[#allocation7 + $0xf0] sm:$0xff]
    %v269 = vld [vmem:[#allocation7 + $0xf8] sm:$0xff]
    %v270 = vld [vmem:[#allocation7 + $0x100] sm:$0xff]
    %v271 = vld [vmem:[#allocation7 + $0x108] sm:$0xff]
    %v272 = vld [vmem:[#allocation7 + $0x110] sm:$0xff]
    %v273 = vld [vmem:[#allocation7 + $0x118] sm:$0xff]
    %v274 = vld [vmem:[#allocation7 + $0x120] sm:$0xff]
    %v275 = vld [vmem:[#allocation7 + $0x128] sm:$0xff]
    %v276 = vld [vmem:[#allocation7 + $0x130] sm:$0xff]
    %v277 = vld [vmem:[#allocation7 + $0x138] sm:$0xff]
    %v278 = vld [vmem:[#allocation7 + $0x140] sm:$0xff]
    %v279 = vld [vmem:[#allocation7 + $0x148] sm:$0xff]
    %v280 = vld [vmem:[#allocation7 + $0x150] sm:$0xff]
    %v281 = vld [vmem:[#allocation7 + $0x158] sm:$0xff]
    %v282 = vld [vmem:[#allocation7 + $0x160] sm:$0xff]
    %v283 = vld [vmem:[#allocation7 + $0x168] sm:$0xff]
    %v284 = vld [vmem:[#allocation7 + $0x170] sm:$0xff]
    %v285 = vld [vmem:[#allocation7 + $0x178] sm:$0xff]
    %v286 = vld [vmem:[#allocation7 + $0x180] sm:$0xff]
    %v287 = vld [vmem:[#allocation7 + $0x188] sm:$0xff]
    %v288 = vld [vmem:[#allocation7 + $0x190] sm:$0xff]
    %v289 = vld [vmem:[#allocation7 + $0x198] sm:$0xff]
    %v290 = vld [vmem:[#allocation7 + $0x1a0] sm:$0xff]
    %v291 = vld [vmem:[#allocation7 + $0x1a8] sm:$0xff]
    %v292 = vld [vmem:[#allocation7 + $0x1b0] sm:$0xff]
    %v293 = vld [vmem:[#allocation7 + $0x1b8] sm:$0xff]
    %v294 = vld [vmem:[#allocation7 + $0x1c0] sm:$0xff]
    %v295 = vld [vmem:[#allocation7 + $0x1c8] sm:$0xff]
    %v296 = vld [vmem:[#allocation7 + $0x1d0] sm:$0xff]
    %v297 = vld [vmem:[#allocation7 + $0x1d8] sm:$0xff]
    %v298 = vld [vmem:[#allocation7 + $0x1e0] sm:$0xff]
    %v299 = vld [vmem:[#allocation7 + $0x1e8] sm:$0xff]
    %v300 = vld [vmem:[#allocation7 + $0x1f0] sm:$0xff]
    %v301 = vld [vmem:[#allocation7 + $0x1f8] sm:$0xff]
    %v302 = vld [vmem:[#allocation7 + $0x200] sm:$0xff]
    %v303 = vld [vmem:[#allocation7 + $0x208] sm:$0xff]
    %v304 = vld [vmem:[#allocation7 + $0x210] sm:$0xff]
    %v305 = vld [vmem:[#allocation7 + $0x218] sm:$0xff]
    %v306 = vld [vmem:[#allocation7 + $0x220] sm:$0xff]
    %v307 = vld [vmem:[#allocation7 + $0x228] sm:$0xff]
    %v308 = vld [vmem:[#allocation7 + $0x230] sm:$0xff]
    %v309 = vld [vmem:[#allocation7 + $0x238] sm:$0xff]
    %v310 = vld [vmem:[#allocation7 + $0x240] sm:$0xff]
    %v311 = vld [vmem:[#allocation7 + $0x248] sm:$0xff]
    %v312 = vld [vmem:[#allocation7 + $0x250] sm:$0xff]
    %v313 = vld [vmem:[#allocation7 + $0x258] sm:$0xff]
    %v314 = vld [vmem:[#allocation7 + $0x260] sm:$0xff]
    %v315 = vld [vmem:[#allocation7 + $0x268] sm:$0xff]
    %v316 = vld [vmem:[#allocation7 + $0x270] sm:$0xff]
    %v317 = vld [vmem:[#allocation7 + $0x278] sm:$0xff]
    %v318 = vld [vmem:[#allocation7 + $0x280] sm:$0xff]
    %v319 = vld [vmem:[#allocation7 + $0x288] sm:$0xff]
    %v320 = vld [vmem:[#allocation7 + $0x290] sm:$0xff]
    %v321 = vld [vmem:[#allocation7 + $0x298] sm:$0xff]
    %v322 = vld [vmem:[#allocation7 + $0x2a0] sm:$0xff]
    %v323 = vld [vmem:[#allocation7 + $0x2a8] sm:$0xff]
    %v324 = vld [vmem:[#allocation7 + $0x2b0] sm:$0xff]
    %v325 = vld [vmem:[#allocation7 + $0x2b8] sm:$0xff]
    %v326 = vld [vmem:[#allocation7 + $0x2c0] sm:$0xff]
    %v327 = vld [vmem:[#allocation7 + $0x2c8] sm:$0xff]
    %v328 = vld [vmem:[#allocation7 + $0x2d0] sm:$0xff]
    %v329 = vld [vmem:[#allocation7 + $0x2d8] sm:$0xff]
    %v330 = vld [vmem:[#allocation7 + $0x2e0] sm:$0xff]
    %v331 = vld [vmem:[#allocation7 + $0x2e8] sm:$0xff]
    %v332 = vld [vmem:[#allocation7 + $0x2f0] sm:$0xff]
    %v333 = vld [vmem:[#allocation7 + $0x2f8] sm:$0xff]
    %v334 = vld [vmem:[#allocation7 + $0x300] sm:$0xff]
    %v335 = vld [vmem:[#allocation7 + $0x308] sm:$0xff]
    %v336 = vld [vmem:[#allocation7 + $0x310] sm:$0xff]
    %v337 = vld [vmem:[#allocation7 + $0x318] sm:$0xff]
    %v338 = vld [vmem:[#allocation7 + $0x320] sm:$0xff]
    %v339 = vld [vmem:[#allocation7 + $0x328] sm:$0xff]
    %v340 = vld [vmem:[#allocation7 + $0x330] sm:$0xff]
    %v341 = vld [vmem:[#allocation7 + $0x338] sm:$0xff]
    %v342 = vld [vmem:[#allocation7 + $0x340] sm:$0xff]
    %v343 = vld [vmem:[#allocation7 + $0x348] sm:$0xff]
    %v344 = vld [vmem:[#allocation7 + $0x350] sm:$0xff]
    %v345 = vld [vmem:[#allocation7 + $0x358] sm:$0xff]
    %v346 = vld [vmem:[#allocation7 + $0x360] sm:$0xff]
    %v347 = vld [vmem:[#allocation7 + $0x368] sm:$0xff]
    %v348 = vld [vmem:[#allocation7 + $0x370] sm:$0xff]
    %v349 = vld [vmem:[#allocation7 + $0x378] sm:$0xff]
    %v350 = vld [vmem:[#allocation7 + $0x380] sm:$0xff]
    %v351 = vld [vmem:[#allocation7 + $0x388] sm:$0xff]
    %v352 = vld [vmem:[#allocation7 + $0x390] sm:$0xff]
    %v353 = vld [vmem:[#allocation7 + $0x398] sm:$0xff]
    %v354 = vld [vmem:[#allocation7 + $0x3a0] sm:$0xff]
    %v355 = vld [vmem:[#allocation7 + $0x3a8] sm:$0xff]
    %v356 = vld [vmem:[#allocation7 + $0x3b0] sm:$0xff]
    %v357 = vld [vmem:[#allocation7 + $0x3b8] sm:$0xff]
    %v358 = vld [vmem:[#allocation7 + $0x3c0] sm:$0xff]
    %v359 = vld [vmem:[#allocation7 + $0x3c8] sm:$0xff]
    %v360 = vld [vmem:[#allocation7 + $0x3d0] sm:$0xff]
    %v361 = vld [vmem:[#allocation7 + $0x3d8] sm:$0xff]
    %v362 = vld [vmem:[#allocation7 + $0x3e0] sm:$0xff]
    %v363 = vld [vmem:[#allocation7 + $0x3e8] sm:$0xff]
    %v364 = vld [vmem:[#allocation7 + $0x3f0] sm:$0xff]
    %v365 = vld [vmem:[#allocation7 + $0x3f8] sm:$0xff]
    %v366 = vld [vmem:[%s4] sm:$0xf]
    %v368 = vlaneseq
    %v369 = vshrl.u32 %v368, 7
    %v370 = vsub.s32 0, %v369
    %v371 = vrot.slane %v366, %v370
    %v372 = vlaneseq
    %v373 = vshrl.u32 %v372, 7
    %v374 = vsub.s32 1, %v373
    %v375 = vrot.slane %v366, %v374
    %v376 = vlaneseq
    %v377 = vshrl.u32 %v376, 7
    %v378 = vsub.s32 2, %v377
    %v379 = vrot.slane %v366, %v378
    %v380 = vlaneseq
    %v381 = vshrl.u32 %v380, 7
    %v382 = vsub.s32 3, %v381
    %v383 = vrot.slane %v366, %v382
    %v516 = vunpack.c.l.b16 %v238
    %v517 = vunpack.c.h.b16 %v238
    %v518 = vunpack.c.l.b16 %v239
    %v519 = vunpack.c.h.b16 %v239
    %v520 = vunpack.c.l.b16 %v240
    %v521 = vunpack.c.h.b16 %v240
    %v522 = vunpack.c.l.b16 %v241
    %v523 = vunpack.c.h.b16 %v241
    %v524 = vunpack.c.l.b16 %v242
    %v525 = vunpack.c.h.b16 %v242
    %v526 = vunpack.c.l.b16 %v243
    %v527 = vunpack.c.h.b16 %v243
    %v528 = vunpack.c.l.b16 %v244
    %v529 = vunpack.c.h.b16 %v244
    %v530 = vunpack.c.l.b16 %v245
    %v531 = vunpack.c.h.b16 %v245
    %v532 = vunpack.c.l.b16 %v246
    %v533 = vunpack.c.h.b16 %v246
    %v534 = vunpack.c.l.b16 %v247
    %v535 = vunpack.c.h.b16 %v247
    %v536 = vunpack.c.l.b16 %v248
    %v537 = vunpack.c.h.b16 %v248
    %v538 = vunpack.c.l.b16 %v249
    %v539 = vunpack.c.h.b16 %v249
    %v540 = vunpack.c.l.b16 %v250
    %v541 = vunpack.c.h.b16 %v250
    %v542 = vunpack.c.l.b16 %v251
    %v543 = vunpack.c.h.b16 %v251
    %v544 = vunpack.c.l.b16 %v252
    %v545 = vunpack.c.h.b16 %v252
    %v546 = vunpack.c.l.b16 %v253
    %v547 = vunpack.c.h.b16 %v253
    %v548 = vunpack.c.l.b16 %v254
    %v549 = vunpack.c.h.b16 %v254
    %v550 = vunpack.c.l.b16 %v255
    %v551 = vunpack.c.h.b16 %v255
    %v552 = vunpack.c.l.b16 %v256
    %v553 = vunpack.c.h.b16 %v256
    %v554 = vunpack.c.l.b16 %v257
    %v555 = vunpack.c.h.b16 %v257
    %v556 = vunpack.c.l.b16 %v258
    %v557 = vunpack.c.h.b16 %v258
    %v558 = vunpack.c.l.b16 %v259
    %v559 = vunpack.c.h.b16 %v259
    %v560 = vunpack.c.l.b16 %v260
    %v561 = vunpack.c.h.b16 %v260
    %v562 = vunpack.c.l.b16 %v261
    %v563 = vunpack.c.h.b16 %v261
    %v564 = vunpack.c.l.b16 %v262
    %v565 = vunpack.c.h.b16 %v262
    %v566 = vunpack.c.l.b16 %v263
    %v567 = vunpack.c.h.b16 %v263
    %v568 = vunpack.c.l.b16 %v264
    %v569 = vunpack.c.h.b16 %v264
    %v570 = vunpack.c.l.b16 %v265
    %v571 = vunpack.c.h.b16 %v265
    %v572 = vunpack.c.l.b16 %v266
    %v573 = vunpack.c.h.b16 %v266
    %v574 = vunpack.c.l.b16 %v267
    %v575 = vunpack.c.h.b16 %v267
    %v576 = vunpack.c.l.b16 %v268
    %v577 = vunpack.c.h.b16 %v268
    %v578 = vunpack.c.l.b16 %v269
    %v579 = vunpack.c.h.b16 %v269
    %v580 = vunpack.c.l.b16 %v270
    %v581 = vunpack.c.h.b16 %v270
    %v582 = vunpack.c.l.b16 %v271
    %v583 = vunpack.c.h.b16 %v271
    %v584 = vunpack.c.l.b16 %v272
    %v585 = vunpack.c.h.b16 %v272
    %v586 = vunpack.c.l.b16 %v273
    %v587 = vunpack.c.h.b16 %v273
    %v588 = vunpack.c.l.b16 %v274
    %v589 = vunpack.c.h.b16 %v274
    %v590 = vunpack.c.l.b16 %v275
    %v591 = vunpack.c.h.b16 %v275
    %v592 = vunpack.c.l.b16 %v276
    %v593 = vunpack.c.h.b16 %v276
    %v594 = vunpack.c.l.b16 %v277
    %v595 = vunpack.c.h.b16 %v277
    %v596 = vunpack.c.l.b16 %v278
    %v597 = vunpack.c.h.b16 %v278
    %v598 = vunpack.c.l.b16 %v279
    %v599 = vunpack.c.h.b16 %v279
    %v600 = vunpack.c.l.b16 %v280
    %v601 = vunpack.c.h.b16 %v280
    %v602 = vunpack.c.l.b16 %v281
    %v603 = vunpack.c.h.b16 %v281
    %v604 = vunpack.c.l.b16 %v282
    %v605 = vunpack.c.h.b16 %v282
    %v606 = vunpack.c.l.b16 %v283
    %v607 = vunpack.c.h.b16 %v283
    %v608 = vunpack.c.l.b16 %v284
    %v609 = vunpack.c.h.b16 %v284
    %v610 = vunpack.c.l.b16 %v285
    %v611 = vunpack.c.h.b16 %v285
    %v612 = vunpack.c.l.b16 %v286
    %v613 = vunpack.c.h.b16 %v286
    %v614 = vunpack.c.l.b16 %v287
    %v615 = vunpack.c.h.b16 %v287
    %v616 = vunpack.c.l.b16 %v288
    %v617 = vunpack.c.h.b16 %v288
    %v618 = vunpack.c.l.b16 %v289
    %v619 = vunpack.c.h.b16 %v289
    %v620 = vunpack.c.l.b16 %v290
    %v621 = vunpack.c.h.b16 %v290
    %v622 = vunpack.c.l.b16 %v291
    %v623 = vunpack.c.h.b16 %v291
    %v624 = vunpack.c.l.b16 %v292
    %v625 = vunpack.c.h.b16 %v292
    %v626 = vunpack.c.l.b16 %v293
    %v627 = vunpack.c.h.b16 %v293
    %v628 = vunpack.c.l.b16 %v294
    %v629 = vunpack.c.h.b16 %v294
    %v630 = vunpack.c.l.b16 %v295
    %v631 = vunpack.c.h.b16 %v295
    %v632 = vunpack.c.l.b16 %v296
    %v633 = vunpack.c.h.b16 %v296
    %v634 = vunpack.c.l.b16 %v297
    %v635 = vunpack.c.h.b16 %v297
    %v636 = vunpack.c.l.b16 %v298
    %v637 = vunpack.c.h.b16 %v298
    %v638 = vunpack.c.l.b16 %v299
    %v639 = vunpack.c.h.b16 %v299
    %v640 = vunpack.c.l.b16 %v300
    %v641 = vunpack.c.h.b16 %v300
    %v642 = vunpack.c.l.b16 %v301
    %v643 = vunpack.c.h.b16 %v301
    %v644 = vunpack.c.l.b16 %v302
    %v645 = vunpack.c.h.b16 %v302
    %v646 = vunpack.c.l.b16 %v303
    %v647 = vunpack.c.h.b16 %v303
    %v648 = vunpack.c.l.b16 %v304
    %v649 = vunpack.c.h.b16 %v304
    %v650 = vunpack.c.l.b16 %v305
    %v651 = vunpack.c.h.b16 %v305
    %v652 = vunpack.c.l.b16 %v306
    %v653 = vunpack.c.h.b16 %v306
    %v654 = vunpack.c.l.b16 %v307
    %v655 = vunpack.c.h.b16 %v307
    %v656 = vunpack.c.l.b16 %v308
    %v657 = vunpack.c.h.b16 %v308
    %v658 = vunpack.c.l.b16 %v309
    %v659 = vunpack.c.h.b16 %v309
    %v660 = vunpack.c.l.b16 %v310
    %v661 = vunpack.c.h.b16 %v310
    %v662 = vunpack.c.l.b16 %v311
    %v663 = vunpack.c.h.b16 %v311
    %v664 = vunpack.c.l.b16 %v312
    %v665 = vunpack.c.h.b16 %v312
    %v666 = vunpack.c.l.b16 %v313
    %v667 = vunpack.c.h.b16 %v313
    %v668 = vunpack.c.l.b16 %v314
    %v669 = vunpack.c.h.b16 %v314
    %v670 = vunpack.c.l.b16 %v315
    %v671 = vunpack.c.h.b16 %v315
    %v672 = vunpack.c.l.b16 %v316
    %v673 = vunpack.c.h.b16 %v316
    %v674 = vunpack.c.l.b16 %v317
    %v675 = vunpack.c.h.b16 %v317
    %v676 = vunpack.c.l.b16 %v318
    %v677 = vunpack.c.h.b16 %v318
    %v678 = vunpack.c.l.b16 %v319
    %v679 = vunpack.c.h.b16 %v319
    %v680 = vunpack.c.l.b16 %v320
    %v681 = vunpack.c.h.b16 %v320
    %v682 = vunpack.c.l.b16 %v321
    %v683 = vunpack.c.h.b16 %v321
    %v684 = vunpack.c.l.b16 %v322
    %v685 = vunpack.c.h.b16 %v322
    %v686 = vunpack.c.l.b16 %v323
    %v687 = vunpack.c.h.b16 %v323
    %v688 = vunpack.c.l.b16 %v324
    %v689 = vunpack.c.h.b16 %v324
    %v690 = vunpack.c.l.b16 %v325
    %v691 = vunpack.c.h.b16 %v325
    %v692 = vunpack.c.l.b16 %v326
    %v693 = vunpack.c.h.b16 %v326
    %v694 = vunpack.c.l.b16 %v327
    %v695 = vunpack.c.h.b16 %v327
    %v696 = vunpack.c.l.b16 %v328
    %v697 = vunpack.c.h.b16 %v328
    %v698 = vunpack.c.l.b16 %v329
    %v699 = vunpack.c.h.b16 %v329
    %v700 = vunpack.c.l.b16 %v330
    %v701 = vunpack.c.h.b16 %v330
    %v702 = vunpack.c.l.b16 %v331
    %v703 = vunpack.c.h.b16 %v331
    %v704 = vunpack.c.l.b16 %v332
    %v705 = vunpack.c.h.b16 %v332
    %v706 = vunpack.c.l.b16 %v333
    %v707 = vunpack.c.h.b16 %v333
    %v708 = vunpack.c.l.b16 %v334
    %v709 = vunpack.c.h.b16 %v334
    %v710 = vunpack.c.l.b16 %v335
    %v711 = vunpack.c.h.b16 %v335
    %v712 = vunpack.c.l.b16 %v336
    %v713 = vunpack.c.h.b16 %v336
    %v714 = vunpack.c.l.b16 %v337
    %v715 = vunpack.c.h.b16 %v337
    %v716 = vunpack.c.l.b16 %v338
    %v717 = vunpack.c.h.b16 %v338
    %v718 = vunpack.c.l.b16 %v339
    %v719 = vunpack.c.h.b16 %v339
    %v720 = vunpack.c.l.b16 %v340
    %v721 = vunpack.c.h.b16 %v340
    %v722 = vunpack.c.l.b16 %v341
    %v723 = vunpack.c.h.b16 %v341
    %v724 = vunpack.c.l.b16 %v342
    %v725 = vunpack.c.h.b16 %v342
    %v726 = vunpack.c.l.b16 %v343
    %v727 = vunpack.c.h.b16 %v343
    %v728 = vunpack.c.l.b16 %v344
    %v729 = vunpack.c.h.b16 %v344
    %v730 = vunpack.c.l.b16 %v345
    %v731 = vunpack.c.h.b16 %v345
    %v732 = vunpack.c.l.b16 %v346
    %v733 = vunpack.c.h.b16 %v346
    %v734 = vunpack.c.l.b16 %v347
    %v735 = vunpack.c.h.b16 %v347
    %v736 = vunpack.c.l.b16 %v348
    %v737 = vunpack.c.h.b16 %v348
    %v738 = vunpack.c.l.b16 %v349
    %v739 = vunpack.c.h.b16 %v349
    %v740 = vunpack.c.l.b16 %v350
    %v741 = vunpack.c.h.b16 %v350
    %v742 = vunpack.c.l.b16 %v351
    %v743 = vunpack.c.h.b16 %v351
    %v744 = vunpack.c.l.b16 %v352
    %v745 = vunpack.c.h.b16 %v352
    %v746 = vunpack.c.l.b16 %v353
    %v747 = vunpack.c.h.b16 %v353
    %v748 = vunpack.c.l.b16 %v354
    %v749 = vunpack.c.h.b16 %v354
    %v750 = vunpack.c.l.b16 %v355
    %v751 = vunpack.c.h.b16 %v355
    %v752 = vunpack.c.l.b16 %v356
    %v753 = vunpack.c.h.b16 %v356
    %v754 = vunpack.c.l.b16 %v357
    %v755 = vunpack.c.h.b16 %v357
    %v756 = vunpack.c.l.b16 %v358
    %v757 = vunpack.c.h.b16 %v358
    %v758 = vunpack.c.l.b16 %v359
    %v759 = vunpack.c.h.b16 %v359
    %v760 = vunpack.c.l.b16 %v360
    %v761 = vunpack.c.h.b16 %v360
    %v762 = vunpack.c.l.b16 %v361
    %v763 = vunpack.c.h.b16 %v361
    %v764 = vunpack.c.l.b16 %v362
    %v765 = vunpack.c.h.b16 %v362
    %v766 = vunpack.c.l.b16 %v363
    %v767 = vunpack.c.h.b16 %v363
    %v768 = vunpack.c.l.b16 %v364
    %v769 = vunpack.c.h.b16 %v364
    %v770 = vunpack.c.l.b16 %v365
    %v771 = vunpack.c.h.b16 %v365
    %v772 = vpack.c.b16 %v520, %v516
    %v773 = vpack.c.b16 %v521, %v517
    %v774 = vpack.c.b16 %v522, %v518
    %v775 = vpack.c.b16 %v523, %v519
    %v776 = vpack.c.b16 %v528, %v524
    %v777 = vpack.c.b16 %v529, %v525
    %v778 = vpack.c.b16 %v530, %v526
    %v779 = vpack.c.b16 %v531, %v527
    %v780 = vpack.c.b16 %v536, %v532
    %v781 = vpack.c.b16 %v537, %v533
    %v782 = vpack.c.b16 %v538, %v534
    %v783 = vpack.c.b16 %v539, %v535
    %v784 = vpack.c.b16 %v544, %v540
    %v785 = vpack.c.b16 %v545, %v541
    %v786 = vpack.c.b16 %v546, %v542
    %v787 = vpack.c.b16 %v547, %v543
    %v788 = vpack.c.b16 %v552, %v548
    %v789 = vpack.c.b16 %v553, %v549
    %v790 = vpack.c.b16 %v554, %v550
    %v791 = vpack.c.b16 %v555, %v551
    %v792 = vpack.c.b16 %v560, %v556
    %v793 = vpack.c.b16 %v561, %v557
    %v794 = vpack.c.b16 %v562, %v558
    %v795 = vpack.c.b16 %v563, %v559
    %v796 = vpack.c.b16 %v568, %v564
    %v797 = vpack.c.b16 %v569, %v565
    %v798 = vpack.c.b16 %v570, %v566
    %v799 = vpack.c.b16 %v571, %v567
    %v800 = vpack.c.b16 %v576, %v572
    %v801 = vpack.c.b16 %v577, %v573
    %v802 = vpack.c.b16 %v578, %v574
    %v803 = vpack.c.b16 %v579, %v575
    %v804 = vpack.c.b16 %v584, %v580
    %v805 = vpack.c.b16 %v585, %v581
    %v806 = vpack.c.b16 %v586, %v582
    %v807 = vpack.c.b16 %v587, %v583
    %v808 = vpack.c.b16 %v592, %v588
    %v809 = vpack.c.b16 %v593, %v589
    %v810 = vpack.c.b16 %v594, %v590
    %v811 = vpack.c.b16 %v595, %v591
    %v812 = vpack.c.b16 %v600, %v596
    %v813 = vpack.c.b16 %v601, %v597
    %v814 = vpack.c.b16 %v602, %v598
    %v815 = vpack.c.b16 %v603, %v599
    %v816 = vpack.c.b16 %v608, %v604
    %v817 = vpack.c.b16 %v609, %v605
    %v818 = vpack.c.b16 %v610, %v606
    %v819 = vpack.c.b16 %v611, %v607
    %v820 = vpack.c.b16 %v616, %v612
    %v821 = vpack.c.b16 %v617, %v613
    %v822 = vpack.c.b16 %v618, %v614
    %v823 = vpack.c.b16 %v619, %v615
    %v824 = vpack.c.b16 %v624, %v620
    %v825 = vpack.c.b16 %v625, %v621
    %v826 = vpack.c.b16 %v626, %v622
    %v827 = vpack.c.b16 %v627, %v623
    %v828 = vpack.c.b16 %v632, %v628
    %v829 = vpack.c.b16 %v633, %v629
    %v830 = vpack.c.b16 %v634, %v630
    %v831 = vpack.c.b16 %v635, %v631
    %v832 = vpack.c.b16 %v640, %v636
    %v833 = vpack.c.b16 %v641, %v637
    %v834 = vpack.c.b16 %v642, %v638
    %v835 = vpack.c.b16 %v643, %v639
    %v836 = vpack.c.b16 %v648, %v644
    %v837 = vpack.c.b16 %v649, %v645
    %v838 = vpack.c.b16 %v650, %v646
    %v839 = vpack.c.b16 %v651, %v647
    %v840 = vpack.c.b16 %v656, %v652
    %v841 = vpack.c.b16 %v657, %v653
    %v842 = vpack.c.b16 %v658, %v654
    %v843 = vpack.c.b16 %v659, %v655
    %v844 = vpack.c.b16 %v664, %v660
    %v845 = vpack.c.b16 %v665, %v661
    %v846 = vpack.c.b16 %v666, %v662
    %v847 = vpack.c.b16 %v667, %v663
    %v848 = vpack.c.b16 %v672, %v668
    %v849 = vpack.c.b16 %v673, %v669
    %v850 = vpack.c.b16 %v674, %v670
    %v851 = vpack.c.b16 %v675, %v671
    %v852 = vpack.c.b16 %v680, %v676
    %v853 = vpack.c.b16 %v681, %v677
    %v854 = vpack.c.b16 %v682, %v678
    %v855 = vpack.c.b16 %v683, %v679
    %v856 = vpack.c.b16 %v688, %v684
    %v857 = vpack.c.b16 %v689, %v685
    %v858 = vpack.c.b16 %v690, %v686
    %v859 = vpack.c.b16 %v691, %v687
    %v860 = vpack.c.b16 %v696, %v692
    %v861 = vpack.c.b16 %v697, %v693
    %v862 = vpack.c.b16 %v698, %v694
    %v863 = vpack.c.b16 %v699, %v695
    %v864 = vpack.c.b16 %v704, %v700
    %v865 = vpack.c.b16 %v705, %v701
    %v866 = vpack.c.b16 %v706, %v702
    %v867 = vpack.c.b16 %v707, %v703
    %v868 = vpack.c.b16 %v712, %v708
    %v869 = vpack.c.b16 %v713, %v709
    %v870 = vpack.c.b16 %v714, %v710
    %v871 = vpack.c.b16 %v715, %v711
    %v872 = vpack.c.b16 %v720, %v716
    %v873 = vpack.c.b16 %v721, %v717
    %v874 = vpack.c.b16 %v722, %v718
    %v875 = vpack.c.b16 %v723, %v719
    %v876 = vpack.c.b16 %v728, %v724
    %v877 = vpack.c.b16 %v729, %v725
    %v878 = vpack.c.b16 %v730, %v726
    %v879 = vpack.c.b16 %v731, %v727
    %v880 = vpack.c.b16 %v736, %v732
    %v881 = vpack.c.b16 %v737, %v733
    %v882 = vpack.c.b16 %v738, %v734
    %v883 = vpack.c.b16 %v739, %v735
    %v884 = vpack.c.b16 %v744, %v740
    %v885 = vpack.c.b16 %v745, %v741
    %v886 = vpack.c.b16 %v746, %v742
    %v887 = vpack.c.b16 %v747, %v743
    %v888 = vpack.c.b16 %v752, %v748
    %v889 = vpack.c.b16 %v753, %v749
    %v890 = vpack.c.b16 %v754, %v750
    %v891 = vpack.c.b16 %v755, %v751
    %v892 = vpack.c.b16 %v760, %v756
    %v893 = vpack.c.b16 %v761, %v757
    %v894 = vpack.c.b16 %v762, %v758
    %v895 = vpack.c.b16 %v763, %v759
    %v896 = vpack.c.b16 %v768, %v764
    %v897 = vpack.c.b16 %v769, %v765
    %v898 = vpack.c.b16 %v770, %v766
    %v899 = vpack.c.b16 %v771, %v767
    %1028 = vmatprep.subr.bf16.mxu0 %v773
    %1029 = vmatpush1.bf16.msra.mxu0 %v772
    %1030 = vmatprep.subr.bf16.mxu0 %v777
    %1031 = vmatpush1.bf16.msra.mxu0 %v776
    %1032 = vmatprep.subr.bf16.mxu0 %v781
    %1033 = vmatpush1.bf16.msra.mxu0 %v780
    %1034 = vmatprep.subr.bf16.mxu0 %v785
    %1035 = vmatpush1.bf16.msra.mxu0 %v784
    %1036 = vmatprep.subr.bf16.mxu0 %v789
    %1037 = vmatpush1.bf16.msra.mxu0 %v788
    %1038 = vmatprep.subr.bf16.mxu0 %v793
    %1039 = vmatpush1.bf16.msra.mxu0 %v792
    %1040 = vmatprep.subr.bf16.mxu0 %v797
    %1041 = vmatpush1.bf16.msra.mxu0 %v796
    %1042 = vmatprep.subr.bf16.mxu0 %v801
    %1043 = vmatpush1.bf16.msra.mxu0 %v800
    %1044 = vmatprep.subr.bf16.mxu0 %v805
    %1045 = vmatpush1.bf16.msra.mxu0 %v804
    %1046 = vmatprep.subr.bf16.mxu0 %v809
    %1047 = vmatpush1.bf16.msra.mxu0 %v808
    %1048 = vmatprep.subr.bf16.mxu0 %v813
    %1049 = vmatpush1.bf16.msra.mxu0 %v812
    %1050 = vmatprep.subr.bf16.mxu0 %v817
    %1051 = vmatpush1.bf16.msra.mxu0 %v816
    %1052 = vmatprep.subr.bf16.mxu0 %v821
    %1053 = vmatpush1.bf16.msra.mxu0 %v820
    %1054 = vmatprep.subr.bf16.mxu0 %v825
    %1055 = vmatpush1.bf16.msra.mxu0 %v824
    %1056 = vmatprep.subr.bf16.mxu0 %v829
    %1057 = vmatpush1.bf16.msra.mxu0 %v828
    %1058 = vmatprep.subr.bf16.mxu0 %v833
    %1059 = vmatpush1.bf16.msra.mxu0 %v832
    %1060 = vmatprep.mubr.bf16.mxu0 %v235
    %1061 = vmatmul.mubr.bf16.gmra.mrb[0].mxu0 %v234
    %v1062 = vpop.f32.mrb[0].mxu0
    %v1063 = vadd.f32 %v371, %v1062
    %v1064 = vpop.f32.mrb[0].mxu0
    %v1065 = vadd.f32 %v375, %v1064
    %v1066 = vpop.f32.mrb[0].mxu0
    %v1067 = vadd.f32 %v371, %v1066
    %v1068 = vpop.f32.mrb[0].mxu0
    %v1069 = vadd.f32 %v375, %v1068
    %1070 = vdwg.mxu0
    %1071 = vmatprep.subr.bf16.mxu0 %v837
    %1072 = vmatpush1.bf16.msra.mxu0 %v836
    %1073 = vmatprep.subr.bf16.mxu0 %v841
    %1074 = vmatpush1.bf16.msra.mxu0 %v840
    %1075 = vmatprep.subr.bf16.mxu0 %v845
    %1076 = vmatpush1.bf16.msra.mxu0 %v844
    %1077 = vmatprep.subr.bf16.mxu0 %v849
    %1078 = vmatpush1.bf16.msra.mxu0 %v848
    %1079 = vmatprep.subr.bf16.mxu0 %v853
    %1080 = vmatpush1.bf16.msra.mxu0 %v852
    %1081 = vmatprep.subr.bf16.mxu0 %v857
    %1082 = vmatpush1.bf16.msra.mxu0 %v856
    %1083 = vmatprep.subr.bf16.mxu0 %v861
    %1084 = vmatpush1.bf16.msra.mxu0 %v860
    %1085 = vmatprep.subr.bf16.mxu0 %v865
    %1086 = vmatpush1.bf16.msra.mxu0 %v864
    %1087 = vmatprep.subr.bf16.mxu0 %v869
    %1088 = vmatpush1.bf16.msra.mxu0 %v868
    %1089 = vmatprep.subr.bf16.mxu0 %v873
    %1090 = vmatpush1.bf16.msra.mxu0 %v872
    %1091 = vmatprep.subr.bf16.mxu0 %v877
    %1092 = vmatpush1.bf16.msra.mxu0 %v876
    %1093 = vmatprep.subr.bf16.mxu0 %v881
    %1094 = vmatpush1.bf16.msra.mxu0 %v880
    %1095 = vmatprep.subr.bf16.mxu0 %v885
    %1096 = vmatpush1.bf16.msra.mxu0 %v884
    %1097 = vmatprep.subr.bf16.mxu0 %v889
    %1098 = vmatpush1.bf16.msra.mxu0 %v888
    %1099 = vmatprep.subr.bf16.mxu0 %v893
    %1100 = vmatpush1.bf16.msra.mxu0 %v892
    %1101 = vmatprep.subr.bf16.mxu0 %v897
    %1102 = vmatpush1.bf16.msra.mxu0 %v896
    %1103 = vmatprep.mubr.bf16.mxu0 %v237
    %1104 = vmatmul.mubr.bf16.gmra.mrb[0].mxu0 %v236
    %v1105 = vpop.f32.mrb[0].mxu0
    %v1106 = vadd.f32 %v1063, %v1105
    %v1107 = vpop.f32.mrb[0].mxu0
    %v1108 = vadd.f32 %v1065, %v1107
    %v1109 = vpop.f32.mrb[0].mxu0
    %v1110 = vadd.f32 %v1067, %v1109
    %v1111 = vpop.f32.mrb[0].mxu0
    %v1112 = vadd.f32 %v1069, %v1111
    %1113 = vdwg.mxu0
    %1114 = vmatprep.subr.bf16.mxu0 %v775
    %1115 = vmatpush1.bf16.msra.mxu0 %v774
    %1116 = vmatprep.subr.bf16.mxu0 %v779
    %1117 = vmatpush1.bf16.msra.mxu0 %v778
    %1118 = vmatprep.subr.bf16.mxu0 %v783
    %1119 = vmatpush1.bf16.msra.mxu0 %v782
    %1120 = vmatprep.subr.bf16.mxu0 %v787
    %1121 = vmatpush1.bf16.msra.mxu0 %v786
    %1122 = vmatprep.subr.bf16.mxu0 %v791
    %1123 = vmatpush1.bf16.msra.mxu0 %v790
    %1124 = vmatprep.subr.bf16.mxu0 %v795
    %1125 = vmatpush1.bf16.msra.mxu0 %v794
    %1126 = vmatprep.subr.bf16.mxu0 %v799
    %1127 = vmatpush1.bf16.msra.mxu0 %v798
    %1128 = vmatprep.subr.bf16.mxu0 %v803
    %1129 = vmatpush1.bf16.msra.mxu0 %v802
    %1130 = vmatprep.subr.bf16.mxu0 %v807
    %1131 = vmatpush1.bf16.msra.mxu0 %v806
    %1132 = vmatprep.subr.bf16.mxu0 %v811
    %1133 = vmatpush1.bf16.msra.mxu0 %v810
    %1134 = vmatprep.subr.bf16.mxu0 %v815
    %1135 = vmatpush1.bf16.msra.mxu0 %v814
    %1136 = vmatprep.subr.bf16.mxu0 %v819
    %1137 = vmatpush1.bf16.msra.mxu0 %v818
    %1138 = vmatprep.subr.bf16.mxu0 %v823
    %1139 = vmatpush1.bf16.msra.mxu0 %v822
    %1140 = vmatprep.subr.bf16.mxu0 %v827
    %1141 = vmatpush1.bf16.msra.mxu0 %v826
    %1142 = vmatprep.subr.bf16.mxu0 %v831
    %1143 = vmatpush1.bf16.msra.mxu0 %v830
    %1144 = vmatprep.subr.bf16.mxu0 %v835
    %1145 = vmatpush1.bf16.msra.mxu0 %v834
    %1146 = vmatprep.mubr.bf16.mxu0 %v235
    %1147 = vmatmul.mubr.bf16.gmra.mrb[0].mxu0 %v234
    %v1148 = vpop.f32.mrb[0].mxu0
    %v1149 = vadd.f32 %v379, %v1148
    %v1150 = vpop.f32.mrb[0].mxu0
    %v1151 = vadd.f32 %v383, %v1150
    %v1152 = vpop.f32.mrb[0].mxu0
    %v1153 = vadd.f32 %v379, %v1152
    %v1154 = vpop.f32.mrb[0].mxu0
    %v1155 = vadd.f32 %v383, %v1154
    %1156 = vdwg.mxu0
    %1157 = vmatprep.subr.bf16.mxu0 %v839
    %1158 = vmatpush1.bf16.msra.mxu0 %v838
    %1159 = vmatprep.subr.bf16.mxu0 %v843
    %1160 = vmatpush1.bf16.msra.mxu0 %v842
    %1161 = vmatprep.subr.bf16.mxu0 %v847
    %1162 = vmatpush1.bf16.msra.mxu0 %v846
    %1163 = vmatprep.subr.bf16.mxu0 %v851
    %1164 = vmatpush1.bf16.msra.mxu0 %v850
    %1165 = vmatprep.subr.bf16.mxu0 %v855
    %1166 = vmatpush1.bf16.msra.mxu0 %v854
    %1167 = vmatprep.subr.bf16.mxu0 %v859
    %1168 = vmatpush1.bf16.msra.mxu0 %v858
    %1169 = vmatprep.subr.bf16.mxu0 %v863
    %1170 = vmatpush1.bf16.msra.mxu0 %v862
    %1171 = vmatprep.subr.bf16.mxu0 %v867
    %1172 = vmatpush1.bf16.msra.mxu0 %v866
    %1173 = vmatprep.subr.bf16.mxu0 %v871
    %1174 = vmatpush1.bf16.msra.mxu0 %v870
    %1175 = vmatprep.subr.bf16.mxu0 %v875
    %1176 = vmatpush1.bf16.msra.mxu0 %v874
    %1177 = vmatprep.subr.bf16.mxu0 %v879
    %1178 = vmatpush1.bf16.msra.mxu0 %v878
    %1179 = vmatprep.subr.bf16.mxu0 %v883
    %1180 = vmatpush1.bf16.msra.mxu0 %v882
    %1181 = vmatprep.subr.bf16.mxu0 %v887
    %1182 = vmatpush1.bf16.msra.mxu0 %v886
    %1183 = vmatprep.subr.bf16.mxu0 %v891
    %1184 = vmatpush1.bf16.msra.mxu0 %v890
    %1185 = vmatprep.subr.bf16.mxu0 %v895
    %1186 = vmatpush1.bf16.msra.mxu0 %v894
    %1187 = vmatprep.subr.bf16.mxu0 %v899
    %1188 = vmatpush1.bf16.msra.mxu0 %v898
    %1189 = vmatprep.mubr.bf16.mxu0 %v237
    %1190 = vmatmul.mubr.bf16.gmra.mrb[0].mxu0 %v236
    %v1191 = vpop.f32.mrb[0].mxu0
    %v1192 = vadd.f32 %v1149, %v1191
    %v1193 = vpop.f32.mrb[0].mxu0
    %v1194 = vadd.f32 %v1151, %v1193
    %v1195 = vpop.f32.mrb[0].mxu0
    %v1196 = vadd.f32 %v1153, %v1195
    %v1197 = vpop.f32.mrb[0].mxu0
    %v1198 = vadd.f32 %v1155, %v1197
    %1199 = vdwg.mxu0
    %v1200 = vmax.f32 %v1106, 0.0
    %v1201 = vmax.f32 %v1108, 0.0
    %v1202 = vmax.f32 %v1192, 0.0
    %v1203 = vmax.f32 %v1194, 0.0
    %v1204 = vmax.f32 %v1110, 0.0
    %v1205 = vmax.f32 %v1112, 0.0
    %v1206 = vmax.f32 %v1196, 0.0
    %v1207 = vmax.f32 %v1198, 0.0
    %v1208 = vpack.c.bf16 %v1204, %v1200
    %v1209 = vpack.c.bf16 %v1205, %v1201
    %v1210 = vpack.c.bf16 %v1206, %v1202
    %v1211 = vpack.c.bf16 %v1207, %v1203
    %v1212 = vld [vmem:[#allocation8] sm:$0xf]
    %v1213 = vld [vmem:[#allocation8 + $0x4] sm:$0xf]
    %v1214 = vld [vmem:[#allocation8 + $0x8] sm:$0xf]
    %v1215 = vld [vmem:[#allocation8 + $0xc] sm:$0xf]
    %v1216 = vld [vmem:[#allocation8 + $0x10] sm:$0xf]
    %v1217 = vld [vmem:[#allocation8 + $0x14] sm:$0xf]
    %v1218 = vld [vmem:[#allocation8 + $0x18] sm:$0xf]
    %v1219 = vld [vmem:[#allocation8 + $0x1c] sm:$0xf]
    %v1220 = vld [vmem:[#allocation8 + $0x20] sm:$0xf]
    %v1221 = vld [vmem:[#allocation8 + $0x24] sm:$0xf]
    %v1222 = vld [vmem:[#allocation8 + $0x28] sm:$0xf]
    %v1223 = vld [vmem:[#allocation8 + $0x2c] sm:$0xf]
    %v1224 = vld [vmem:[#allocation8 + $0x30] sm:$0xf]
    %v1225 = vld [vmem:[#allocation8 + $0x34] sm:$0xf]
    %v1226 = vld [vmem:[#allocation8 + $0x38] sm:$0xf]
    %v1227 = vld [vmem:[#allocation8 + $0x3c] sm:$0xf]
    %v1228 = vld [vmem:[#allocation8 + $0x40] sm:$0xf]
    %v1229 = vld [vmem:[#allocation8 + $0x44] sm:$0xf]
    %v1230 = vld [vmem:[#allocation8 + $0x48] sm:$0xf]
    %v1231 = vld [vmem:[#allocation8 + $0x4c] sm:$0xf]
    %v1232 = vld [vmem:[#allocation8 + $0x50] sm:$0xf]
    %v1233 = vld [vmem:[#allocation8 + $0x54] sm:$0xf]
    %v1234 = vld [vmem:[#allocation8 + $0x58] sm:$0xf]
    %v1235 = vld [vmem:[#allocation8 + $0x5c] sm:$0xf]
    %v1236 = vld [vmem:[#allocation8 + $0x60] sm:$0xf]
    %v1237 = vld [vmem:[#allocation8 + $0x64] sm:$0xf]
    %v1238 = vld [vmem:[#allocation8 + $0x68] sm:$0xf]
    %v1239 = vld [vmem:[#allocation8 + $0x6c] sm:$0xf]
    %v1240 = vld [vmem:[#allocation8 + $0x70] sm:$0xf]
    %v1241 = vld [vmem:[#allocation8 + $0x74] sm:$0xf]
    %v1242 = vld [vmem:[#allocation8 + $0x78] sm:$0xf]
    %v1243 = vld [vmem:[#allocation8 + $0x7c] sm:$0xf]
    %v1244 = vld [vmem:[#allocation8 + $0x80] sm:$0xf]
    %v1245 = vld [vmem:[#allocation8 + $0x84] sm:$0xf]
    %v1246 = vld [vmem:[#allocation8 + $0x88] sm:$0xf]
    %v1247 = vld [vmem:[#allocation8 + $0x8c] sm:$0xf]
    %v1248 = vld [vmem:[#allocation8 + $0x90] sm:$0xf]
    %v1249 = vld [vmem:[#allocation8 + $0x94] sm:$0xf]
    %v1250 = vld [vmem:[#allocation8 + $0x98] sm:$0xf]
    %v1251 = vld [vmem:[#allocation8 + $0x9c] sm:$0xf]
    %v1252 = vld [vmem:[#allocation8 + $0xa0] sm:$0xf]
    %v1253 = vld [vmem:[#allocation8 + $0xa4] sm:$0xf]
    %v1254 = vld [vmem:[#allocation8 + $0xa8] sm:$0xf]
    %v1255 = vld [vmem:[#allocation8 + $0xac] sm:$0xf]
    %v1256 = vld [vmem:[#allocation8 + $0xb0] sm:$0xf]
    %v1257 = vld [vmem:[#allocation8 + $0xb4] sm:$0xf]
    %v1258 = vld [vmem:[#allocation8 + $0xb8] sm:$0xf]
    %v1259 = vld [vmem:[#allocation8 + $0xbc] sm:$0xf]
    %v1260 = vld [vmem:[#allocation8 + $0xc0] sm:$0xf]
    %v1261 = vld [vmem:[#allocation8 + $0xc4] sm:$0xf]
    %v1262 = vld [vmem:[#allocation8 + $0xc8] sm:$0xf]
    %v1263 = vld [vmem:[#allocation8 + $0xcc] sm:$0xf]
    %v1264 = vld [vmem:[#allocation8 + $0xd0] sm:$0xf]
    %v1265 = vld [vmem:[#allocation8 + $0xd4] sm:$0xf]
    %v1266 = vld [vmem:[#allocation8 + $0xd8] sm:$0xf]
    %v1267 = vld [vmem:[#allocation8 + $0xdc] sm:$0xf]
    %v1268 = vld [vmem:[#allocation8 + $0xe0] sm:$0xf]
    %v1269 = vld [vmem:[#allocation8 + $0xe4] sm:$0xf]
    %v1270 = vld [vmem:[#allocation8 + $0xe8] sm:$0xf]
    %v1271 = vld [vmem:[#allocation8 + $0xec] sm:$0xf]
    %v1272 = vld [vmem:[#allocation8 + $0xf0] sm:$0xf]
    %v1273 = vld [vmem:[#allocation8 + $0xf4] sm:$0xf]
    %v1274 = vld [vmem:[#allocation8 + $0xf8] sm:$0xf]
    %v1275 = vld [vmem:[#allocation8 + $0xfc] sm:$0xf]
    %v1276 = vld [vmem:[%s6] sm:$0x1]
    %v1278 = vlaneseq
    %v1279 = vshrl.u32 %v1278, 7
    %v1280 = vsub.s32 0, %v1279
    %v1281 = vrot.slane %v1276, %v1280
    %v1347 = vunpack.c.l.b16 %v1212
    %v1348 = vunpack.c.l.b16 %v1213
    %v1349 = vunpack.c.l.b16 %v1214
    %v1350 = vunpack.c.l.b16 %v1215
    %v1351 = vunpack.c.l.b16 %v1216
    %v1352 = vunpack.c.l.b16 %v1217
    %v1353 = vunpack.c.l.b16 %v1218
    %v1354 = vunpack.c.l.b16 %v1219
    %v1355 = vunpack.c.l.b16 %v1220
    %v1356 = vunpack.c.l.b16 %v1221
    %v1357 = vunpack.c.l.b16 %v1222
    %v1358 = vunpack.c.l.b16 %v1223
    %v1359 = vunpack.c.l.b16 %v1224
    %v1360 = vunpack.c.l.b16 %v1225
    %v1361 = vunpack.c.l.b16 %v1226
    %v1362 = vunpack.c.l.b16 %v1227
    %v1363 = vunpack.c.l.b16 %v1228
    %v1364 = vunpack.c.l.b16 %v1229
    %v1365 = vunpack.c.l.b16 %v1230
    %v1366 = vunpack.c.l.b16 %v1231
    %v1367 = vunpack.c.l.b16 %v1232
    %v1368 = vunpack.c.l.b16 %v1233
    %v1369 = vunpack.c.l.b16 %v1234
    %v1370 = vunpack.c.l.b16 %v1235
    %v1371 = vunpack.c.l.b16 %v1236
    %v1372 = vunpack.c.l.b16 %v1237
    %v1373 = vunpack.c.l.b16 %v1238
    %v1374 = vunpack.c.l.b16 %v1239
    %v1375 = vunpack.c.l.b16 %v1240
    %v1376 = vunpack.c.l.b16 %v1241
    %v1377 = vunpack.c.l.b16 %v1242
    %v1378 = vunpack.c.l.b16 %v1243
    %v1379 = vunpack.c.l.b16 %v1244
    %v1380 = vunpack.c.l.b16 %v1245
    %v1381 = vunpack.c.l.b16 %v1246
    %v1382 = vunpack.c.l.b16 %v1247
    %v1383 = vunpack.c.l.b16 %v1248
    %v1384 = vunpack.c.l.b16 %v1249
    %v1385 = vunpack.c.l.b16 %v1250
    %v1386 = vunpack.c.l.b16 %v1251
    %v1387 = vunpack.c.l.b16 %v1252
    %v1388 = vunpack.c.l.b16 %v1253
    %v1389 = vunpack.c.l.b16 %v1254
    %v1390 = vunpack.c.l.b16 %v1255
    %v1391 = vunpack.c.l.b16 %v1256
    %v1392 = vunpack.c.l.b16 %v1257
    %v1393 = vunpack.c.l.b16 %v1258
    %v1394 = vunpack.c.l.b16 %v1259
    %v1395 = vunpack.c.l.b16 %v1260
    %v1396 = vunpack.c.l.b16 %v1261
    %v1397 = vunpack.c.l.b16 %v1262
    %v1398 = vunpack.c.l.b16 %v1263
    %v1399 = vunpack.c.l.b16 %v1264
    %v1400 = vunpack.c.l.b16 %v1265
    %v1401 = vunpack.c.l.b16 %v1266
    %v1402 = vunpack.c.l.b16 %v1267
    %v1403 = vunpack.c.l.b16 %v1268
    %v1404 = vunpack.c.l.b16 %v1269
    %v1405 = vunpack.c.l.b16 %v1270
    %v1406 = vunpack.c.l.b16 %v1271
    %v1407 = vunpack.c.l.b16 %v1272
    %v1408 = vunpack.c.l.b16 %v1273
    %v1409 = vunpack.c.l.b16 %v1274
    %v1410 = vunpack.c.l.b16 %v1275
    %v1411 = vpack.c.b16 %v1348, %v1347
    %v1412 = vpack.c.b16 %v1350, %v1349
    %v1413 = vpack.c.b16 %v1352, %v1351
    %v1414 = vpack.c.b16 %v1354, %v1353
    %v1415 = vpack.c.b16 %v1356, %v1355
    %v1416 = vpack.c.b16 %v1358, %v1357
    %v1417 = vpack.c.b16 %v1360, %v1359
    %v1418 = vpack.c.b16 %v1362, %v1361
    %v1419 = vpack.c.b16 %v1364, %v1363
    %v1420 = vpack.c.b16 %v1366, %v1365
    %v1421 = vpack.c.b16 %v1368, %v1367
    %v1422 = vpack.c.b16 %v1370, %v1369
    %v1423 = vpack.c.b16 %v1372, %v1371
    %v1424 = vpack.c.b16 %v1374, %v1373
    %v1425 = vpack.c.b16 %v1376, %v1375
    %v1426 = vpack.c.b16 %v1378, %v1377
    %v1427 = vpack.c.b16 %v1380, %v1379
    %v1428 = vpack.c.b16 %v1382, %v1381
    %v1429 = vpack.c.b16 %v1384, %v1383
    %v1430 = vpack.c.b16 %v1386, %v1385
    %v1431 = vpack.c.b16 %v1388, %v1387
    %v1432 = vpack.c.b16 %v1390, %v1389
    %v1433 = vpack.c.b16 %v1392, %v1391
    %v1434 = vpack.c.b16 %v1394, %v1393
    %v1435 = vpack.c.b16 %v1396, %v1395
    %v1436 = vpack.c.b16 %v1398, %v1397
    %v1437 = vpack.c.b16 %v1400, %v1399
    %v1438 = vpack.c.b16 %v1402, %v1401
    %v1439 = vpack.c.b16 %v1404, %v1403
    %v1440 = vpack.c.b16 %v1406, %v1405
    %v1441 = vpack.c.b16 %v1408, %v1407
    %v1442 = vpack.c.b16 %v1410, %v1409
    %1475 = vmatprep.subr.bf16.mxu0 0
    %1476 = vmatpush1.bf16.msra.mxu0 %v1411
    %1477 = vmatprep.subr.bf16.mxu0 0
    %1478 = vmatpush1.bf16.msra.mxu0 %v1412
    %1479 = vmatprep.subr.bf16.mxu0 0
    %1480 = vmatpush1.bf16.msra.mxu0 %v1413
    %1481 = vmatprep.subr.bf16.mxu0 0
    %1482 = vmatpush1.bf16.msra.mxu0 %v1414
    %1483 = vmatprep.subr.bf16.mxu0 0
    %1484 = vmatpush1.bf16.msra.mxu0 %v1415
    %1485 = vmatprep.subr.bf16.mxu0 0
    %1486 = vmatpush1.bf16.msra.mxu0 %v1416
    %1487 = vmatprep.subr.bf16.mxu0 0
    %1488 = vmatpush1.bf16.msra.mxu0 %v1417
    %1489 = vmatprep.subr.bf16.mxu0 0
    %1490 = vmatpush1.bf16.msra.mxu0 %v1418
    %1491 = vmatprep.subr.bf16.mxu0 0
    %1492 = vmatpush1.bf16.msra.mxu0 %v1419
    %1493 = vmatprep.subr.bf16.mxu0 0
    %1494 = vmatpush1.bf16.msra.mxu0 %v1420
    %1495 = vmatprep.subr.bf16.mxu0 0
    %1496 = vmatpush1.bf16.msra.mxu0 %v1421
    %1497 = vmatprep.subr.bf16.mxu0 0
    %1498 = vmatpush1.bf16.msra.mxu0 %v1422
    %1499 = vmatprep.subr.bf16.mxu0 0
    %1500 = vmatpush1.bf16.msra.mxu0 %v1423
    %1501 = vmatprep.subr.bf16.mxu0 0
    %1502 = vmatpush1.bf16.msra.mxu0 %v1424
    %1503 = vmatprep.subr.bf16.mxu0 0
    %1504 = vmatpush1.bf16.msra.mxu0 %v1425
    %1505 = vmatprep.subr.bf16.mxu0 0
    %1506 = vmatpush1.bf16.msra.mxu0 %v1426
    %1507 = vmatprep.mubr.bf16.mxu0 %v1209
    %1508 = vmatmul.mubr.bf16.gmra.mrb[0].mxu0 %v1208
    %v1509 = vpop.f32.mrb[0].mxu0
    %v1510 = vadd.f32 %v1281, %v1509
    %v1511 = vpop.f32.mrb[0].mxu0
    %v1512 = vpop.f32.mrb[0].mxu0
    %v1513 = vadd.f32 %v1281, %v1512
    %v1514 = vpop.f32.mrb[0].mxu0
    %1515 = vdwg.mxu0
    %1516 = vmatprep.subr.bf16.mxu0 0
    %1517 = vmatpush1.bf16.msra.mxu0 %v1427
    %1518 = vmatprep.subr.bf16.mxu0 0
    %1519 = vmatpush1.bf16.msra.mxu0 %v1428
    %1520 = vmatprep.subr.bf16.mxu0 0
    %1521 = vmatpush1.bf16.msra.mxu0 %v1429
    %1522 = vmatprep.subr.bf16.mxu0 0
    %1523 = vmatpush1.bf16.msra.mxu0 %v1430
    %1524 = vmatprep.subr.bf16.mxu0 0
    %1525 = vmatpush1.bf16.msra.mxu0 %v1431
    %1526 = vmatprep.subr.bf16.mxu0 0
    %1527 = vmatpush1.bf16.msra.mxu0 %v1432
    %1528 = vmatprep.subr.bf16.mxu0 0
    %1529 = vmatpush1.bf16.msra.mxu0 %v1433
    %1530 = vmatprep.subr.bf16.mxu0 0
    %1531 = vmatpush1.bf16.msra.mxu0 %v1434
    %1532 = vmatprep.subr.bf16.mxu0 0
    %1533 = vmatpush1.bf16.msra.mxu0 %v1435
    %1534 = vmatprep.subr.bf16.mxu0 0
    %1535 = vmatpush1.bf16.msra.mxu0 %v1436
    %1536 = vmatprep.subr.bf16.mxu0 0
    %1537 = vmatpush1.bf16.msra.mxu0 %v1437
    %1538 = vmatprep.subr.bf16.mxu0 0
    %1539 = vmatpush1.bf16.msra.mxu0 %v1438
    %1540 = vmatprep.subr.bf16.mxu0 0
    %1541 = vmatpush1.bf16.msra.mxu0 %v1439
    %1542 = vmatprep.subr.bf16.mxu0 0
    %1543 = vmatpush1.bf16.msra.mxu0 %v1440
    %1544 = vmatprep.subr.bf16.mxu0 0
    %1545 = vmatpush1.bf16.msra.mxu0 %v1441
    %1546 = vmatprep.subr.bf16.mxu0 0
    %1547 = vmatpush1.bf16.msra.mxu0 %v1442
    %1548 = vmatprep.mubr.bf16.mxu0 %v1211
    %1549 = vmatmul.mubr.bf16.gmra.mrb[0].mxu0 %v1210
    %v1550 = vpop.f32.mrb[0].mxu0
    %v1551 = vadd.f32 %v1510, %v1550
    %v1552 = vpop.f32.mrb[0].mxu0
    %v1553 = vpop.f32.mrb[0].mxu0
    %v1554 = vadd.f32 %v1513, %v1553
    %v1555 = vpop.f32.mrb[0].mxu0
    %1556 = vdwg.mxu0
    %v1557 = vlaneseq
    %v1558 = vand.u32 %v1557, 127
    %vm1559 = vcmp.ge.s32.totalorder %v1558, 8
    %v1560 = vmax.f32 %v1551, -20.0
    %v1561 = vmax.f32 %v1554, -20.0
    %v1562 = vmin.f32 %v1560, 2.0
    %v1563 = vmin.f32 %v1561, 2.0
    %v1564 = vsel %vm1559, %v1562, %v1551
    %v1565 = vsel %vm1559, %v1563, %v1554
    %1566 = vst [vmem:[#allocation10] sm:$0xff] %v1564
    %1567 = vst [vmem:[#allocation10 + $0x8] sm:$0xff] %v1565
    // Predicated region
    $region46: #{tpu_custom_call.1} parent=1 // pred_check
      _
    $region47: #{tpu_custom_call.1} parent=1 // pred_check_branch
      %1569 = sbr.rel (0) target = $region49
    $region48: #{tpu_custom_call.1} parent=1 // pred_region
      %s1571 = ssub.s32 256, 256
      %1572 = vsyncadd [#allocation4], %s1571
      %s1573 = sshll.u32 [#allocation10], 4
      %s1574 = int_to_ptr.vmem [resolvable:$true] %s1573
      %1579 = dma.vmem_to_hbm [thread:$0]  %s1574, 256, %s7, [#allocation4], 128, 128, 8
    $region49: #{tpu_custom_call.1} parent=1 // pred_fallthru
      _
    // Predicated region
    $region50: #{tpu_custom_call.1} parent=1 // pred_check
      _
    $region51: #{tpu_custom_call.1} parent=1 // pred_check_branch
      %1581 = sbr.rel (0) target = $region53
    $region52: #{tpu_custom_call.1} parent=1 // pred_region
      %1582 = dma.done [#allocation4], 256
    $region53: #{tpu_custom_call.1} parent=1 // pred_fallthru
      _
    %1583 = vsyncpa [#allocation3], 1
    %1584 = vsyncpa [#allocation6], 1
    %1585 = vsyncpa [#allocation9], 1
    %1586 = vsyncpa [#allocation4], 1

</llo_original>
